<compile_context>
chip_gen: v7x
topology: tpu7x:2x2x1
jax: 0.10.0
libtpu: 0.0.40
codegen_flags: <defaults>
</compile_context>

<pallas_src>
import math
from functools import partial

import jax
import jax.numpy as jnp
from jax import lax
from jax.experimental import pallas as pl
from jax.experimental.pallas import tpu as pltpu


# -------------------------- per-generation config ---------------------------

_VMEM_LIMIT = None


def _vmem_limit_bytes():
    """~75% of physical VMEM (96 MiB on v5e/v6e, 48 MiB on v7x)."""
    global _VMEM_LIMIT
    if _VMEM_LIMIT is None:
        cap = None
        try:
            info = pltpu.get_tpu_info()
            cap = getattr(info, "vmem_capacity_bytes", None)
        except Exception:
            cap = None
        if not cap:
            cap = 64 * 1024 * 1024          # conservative fallback (v7x)
        _VMEM_LIMIT = int(cap) * 3 // 4
    return _VMEM_LIMIT


def _row_tile(r):
    """Row-tile size: biggest 8-multiple that divides r (<=512)."""
    for t in (512, 256, 128, 64, 32, 16, 8):
        if r % t == 0:
            return t
    return r                                 # tiny/odd shapes: full extent


def _ffn_tile(f):
    """dim_feedforward tile (lane dim of the w2 slab -> 128-multiples)."""
    for t in (512, 256, 128):
        if f % t == 0:
            return t
    return f                                 # small F: single full block


def _dot_t(x, w):
    """x @ w.T for torch-layout w (out, in) without materializing w.T."""
    return lax.dot_general(x, w, (((1,), (1,)), ((), ())),
                           preferred_element_type=jnp.float32)


def _layernorm(s, g, b):
    mean = jnp.mean(s, axis=-1, keepdims=True)
    c = s - mean
    var = jnp.mean(c * c, axis=-1, keepdims=True)   # biased var (PyTorch LN)
    return c * lax.rsqrt(var + 1e-5) * g + b


# ----------------------------- Pallas kernels ------------------------------

def _proj_in_kernel(x_ref, w_v_ref, w_a_ref, v_ref, a_ref):
    # Fused linear_in + internal_attention: one pass over the activation tile.
    x = x_ref[...]
    v_ref[...] = _dot_t(x, w_v_ref[...])
    a_ref[...] = _dot_t(x, w_a_ref[...])


def _dispatcher_kernel(v_ref, a_ref, m_ref, o_ref, *, shifts):
    # One grid step = one batch element x one head-half; all heads in the
    # block are handled by a single 3-D roll / multiply per level.
    v = v_ref[0]                                    # (Hb, L, Dh)
    a = a_ref[0] * m_ref[0].astype(jnp.float32)     # (Hb, L, levels), masked
    for i, shift in shifts:
        # torch.roll(V, shifts=shift, dims=1) on the XLU, all heads at once.
        rolled = v if shift == 0 else pltpu.roll(v, shift, axis=1)
        v = v + a[:, :, i:i + 1] * rolled
    o_ref[0] = v                                    # single lane-dense store


def _tail_kernel(v_ref, res_ref, w_out_ref, g1_ref, b1n_ref,
                 w1_ref, bf1_ref, w2_ref, bf2_ref, g2_ref, b2n_ref,
                 o_ref, x1_ref, acc_ref):
    # linear_out + residual + LN1, then FFN (tiled over dim_feedforward) +
    # residual + LN2, fused into one kernel.  Grid = (row_tiles, F_tiles),
    # F is the innermost "arbitrary" axis.
    f = pl.program_id(1)

    @pl.when(f == 0)
    def _():
        y = _dot_t(v_ref[...], w_out_ref[...])                   # linear_out
        x1_ref[...] = _layernorm(res_ref[...] + y, g1_ref[...], b1n_ref[...])
        acc_ref[...] = jnp.zeros_like(acc_ref)

    x1 = x1_ref[...]                                             # (tm, E)
    h = jnp.maximum(_dot_t(x1, w1_ref[...]) + bf1_ref[...], 0.0)  # (tm, tf)
    acc_ref[...] += _dot_t(h, w2_ref[...])                        # (tm, E)

    @pl.when(f == pl.num_programs(1) - 1)
    def _():
        y2 = x1 + acc_ref[...] + bf2_ref[...]
        o_ref[...] = _layernorm(y2, g2_ref[...], b2n_ref[...])


# ----------------------------- pallas wrappers ------------------------------

def proj_in(x, w_in, w_attn):
    r, e = x.shape
    lh = w_attn.shape[0]
    tm = _row_tile(r)
    return pl.pallas_call(
        _proj_in_kernel,
        out_shape=(jax.ShapeDtypeStruct((r, e), jnp.float32),
                   jax.ShapeDtypeStruct((r, lh), jnp.float32)),
        grid=(r // tm,),
        in_specs=[pl.BlockSpec((tm, e), lambda i: (i, 0)),
                  pl.BlockSpec((e, e), lambda i: (0, 0),
                               pipeline_mode=pl.Buffered(1)),
                  pl.BlockSpec((lh, e), lambda i: (0, 0),
                               pipeline_mode=pl.Buffered(1))],
        out_specs=(pl.BlockSpec((tm, e), lambda i: (i, 0)),
                   pl.BlockSpec((tm, lh), lambda i: (i, 0))),
        compiler_params=pltpu.CompilerParams(
            dimension_semantics=("parallel",),
            vmem_limit_bytes=_vmem_limit_bytes()),
    )(x, w_in, w_attn)


def dispatcher_core(v, attn, mask, shifts):
    """v: (B, H, L, Dh); attn, mask: (B, H, L, levels)."""
    b, h, l, dh = v.shape
    levels = attn.shape[-1]
    hsplit = 2 if (h % 2 == 0 and h >= 2) else 1   # megacore balance on v7x
    hb = h // hsplit
    kernel = partial(_dispatcher_kernel, shifts=tuple(shifts))
    return pl.pallas_call(
        kernel,
        out_shape=jax.ShapeDtypeStruct((b, h, l, dh), jnp.float32),
        grid=(b, hsplit),
        in_specs=[pl.BlockSpec((1, hb, l, dh), lambda i, s: (i, s, 0, 0)),
                  pl.BlockSpec((1, hb, l, levels), lambda i, s: (i, s, 0, 0)),
                  pl.BlockSpec((1, hb, l, levels), lambda i, s: (i, s, 0, 0))],
        out_specs=pl.BlockSpec((1, hb, l, dh), lambda i, s: (i, s, 0, 0)),
        compiler_params=pltpu.CompilerParams(
            dimension_semantics=("parallel", "parallel"),
            vmem_limit_bytes=_vmem_limit_bytes()),
    )(v, attn, mask)


def fused_tail(v, resid, w_out, g1, b1n, w1, b1f, w2, b2f, g2, b2n):
    r, e = v.shape
    f_dim = w1.shape[0]
    tm = _row_tile(r)
    tf = _ffn_tile(f_dim)
    return pl.pallas_call(
        _tail_kernel,
        out_shape=jax.ShapeDtypeStruct((r, e), jnp.float32),
        grid=(r // tm, f_dim // tf),
        in_specs=[
            pl.BlockSpec((tm, e), lambda i, f: (i, 0)),     # dispatcher out
            pl.BlockSpec((tm, e), lambda i, f: (i, 0)),     # residual (inp)
            pl.BlockSpec((e, e), lambda i, f: (0, 0),
                         pipeline_mode=pl.Buffered(1)),     # W_out
            pl.BlockSpec((1, e), lambda i, f: (0, 0)),      # norm1 gamma
            pl.BlockSpec((1, e), lambda i, f: (0, 0)),      # norm1 beta
            pl.BlockSpec((tf, e), lambda i, f: (f, 0)),     # W1 (F-streamed)
            pl.BlockSpec((1, tf), lambda i, f: (0, f)),     # b1 (F-streamed)
            pl.BlockSpec((e, tf), lambda i, f: (0, f)),     # W2 (F-streamed)
            pl.BlockSpec((1, e), lambda i, f: (0, 0)),      # b2
            pl.BlockSpec((1, e), lambda i, f: (0, 0)),      # norm2 gamma
            pl.BlockSpec((1, e), lambda i, f: (0, 0)),      # norm2 beta
        ],
        out_specs=pl.BlockSpec((tm, e), lambda i, f: (i, 0)),
        scratch_shapes=[pltpu.VMEM((tm, e), jnp.float32),   # x1 (post-LN1)
                        pltpu.VMEM((tm, e), jnp.float32)],  # FFN accumulator
        compiler_params=pltpu.CompilerParams(
            dimension_semantics=("parallel", "arbitrary"),
            vmem_limit_bytes=_vmem_limit_bytes()),
    )(v, resid, w_out, g1.reshape(1, -1), b1n.reshape(1, -1),
      w1, b1f.reshape(1, -1), w2, b2f.reshape(1, -1),
      g2.reshape(1, -1), b2n.reshape(1, -1))


# ------------------- pltpu.roll shift-convention guard -----------------------

_ROLL_MATCHES_JNP = None


def _roll_matches_jnp():
    """One-time cached probe: does pltpu.roll use the jnp.roll/torch.roll
    convention (positive shift moves elements toward higher indices)?  Runs
    under jax.ensure_compile_time_eval() so it executes eagerly even if the
    forward pass is traced inside jax.jit."""
    global _ROLL_MATCHES_JNP
    if _ROLL_MATCHES_JNP is None:
        def k(x_ref, o_ref):
            o_ref[...] = pltpu.roll(x_ref[...], 1, axis=0)

        with jax.ensure_compile_time_eval():
            x = jnp.arange(8 * 128, dtype=jnp.float32).reshape(8, 128)
            y = pl.pallas_call(
                k, out_shape=jax.ShapeDtypeStruct((8, 128), jnp.float32))(x)
            _ROLL_MATCHES_JNP = bool(jnp.array_equal(y, jnp.roll(x, 1, axis=0)))
    return _ROLL_MATCHES_JNP


# ----------------------------- model wrapper --------------------------------

def init_params(key, d_model, nhead, dim_feedforward, bptt):
    levels = int(math.log(bptt, 2))
    ks = jax.random.split(key, 12)

    def u(k, shape, fan_in):
        bound = 1.0 / math.sqrt(fan_in)
        return jax.random.uniform(k, shape, jnp.float32, -bound, bound)

    return {
        "linear_in_w": u(ks[0], (d_model, d_model), d_model),
        "internal_attn_w": u(ks[1], (levels * nhead, d_model), d_model),
        "linear_out_w": u(ks[2], (d_model, d_model), d_model),
        "linear1_w": u(ks[3], (dim_feedforward, d_model), d_model),
        "linear1_b": u(ks[4], (dim_feedforward,), d_model),
        "linear2_w": u(ks[5], (d_model, dim_feedforward), dim_feedforward),
        "linear2_b": u(ks[6], (d_model,), dim_feedforward),
        "norm1_g": 1.0 + 0.1 * jax.random.normal(ks[7], (d_model,), jnp.float32),
        "norm1_b": 0.1 * jax.random.normal(ks[8], (d_model,), jnp.float32),
        "norm2_g": 1.0 + 0.1 * jax.random.normal(ks[9], (d_model,), jnp.float32),
        "norm2_b": 0.1 * jax.random.normal(ks[10], (d_model,), jnp.float32),
    }


def transformer_encoder_layer(params, src, src_mask, *, d_model, nhead, bptt):
    levels = int(math.log(bptt, 2))
    shifts = [2 ** i for i in range(levels)]
    head_dim = d_model // nhead
    length, batch, embed = src.shape             # (L, B, E), PyTorch convention
    rows_n = batch * length

    # ---------------- DispatcherLayer (self_attn) ----------------
    inp = jnp.transpose(src, (1, 0, 2))          # (B, L, E)
    rows = inp.reshape(rows_n, embed)

    # Fused input projections: linear_in + internal_attention read `rows` once.
    v_rows, a_rows = proj_in(rows, params["linear_in_w"],
                             params["internal_attn_w"])

    # Exact PyTorch flat (raw) reshapes, viewed as (B, H, L, .); these are pure
    # views (no data movement).  Mask keeps its original dtype (cast in-kernel).
    v4 = v_rows.reshape(batch, nhead, length, head_dim)
    a4 = a_rows.reshape(batch, nhead, length, levels)
    m4 = src_mask.reshape(batch, nhead, length, levels)

    forward = _roll_matches_jnp()
    active = []
    for i, s in enumerate(shifts):
        if s > length:
            break
        eff = (s % length) if forward else ((length - s) % length)
        active.append((i, eff))
    v4 = dispatcher_core(v4, a4, m4, active)

    # TODO(synk): dropout / dropout1 / dropout2 and the training-time random
    # shift skip are identity in eval mode and are intentionally omitted.

    # ---- linear_out + residual + norm1 + FFN + residual + norm2 (one kernel,
    #      FFN tiled over dim_feedforward) ----
    x2 = fused_tail(v4.reshape(rows_n, embed), rows,
                    params["linear_out_w"],
                    params["norm1_g"], params["norm1_b"],
                    params["linear1_w"], params["linear1_b"],
                    params["linear2_w"], params["linear2_b"],
                    params["norm2_g"], params["norm2_b"])

    return x2.reshape(batch, length, embed).transpose(1, 0, 2)   # (L, B, E)


# ------------------------- pure-JAX reference -------------------------------

def reference_forward(params, src, src_mask, *, d_model, nhead, bptt):
    levels = int(math.log(bptt, 2))
    shifts = [2 ** i for i in range(levels)]
    head_dim = d_model // nhead
    length, batch, embed = src.shape

    inp = jnp.transpose(src, (1, 0, 2))
    v = inp @ params["linear_in_w"].T
    attn = inp @ params["internal_attn_w"].T
    attn = attn.reshape(batch * nhead, length, levels) * src_mask
    v = v.reshape(batch * nhead, length, head_dim)
    for i, s in enumerate(shifts):
        if s > length:
            break
        v = v + attn[:, :, i:i + 1] * jnp.roll(v, s, axis=1)
    v = v.reshape(batch, length, embed)
    src2 = jnp.transpose(v @ params["linear_out_w"].T, (1, 0, 2))

    def ln(x, g, b):
        m = x.mean(-1, keepdims=True)
        var = ((x - m) ** 2).mean(-1, keepdims=True)
        return (x - m) / jnp.sqrt(var + 1e-5) * g + b

    x = ln(src + src2, params["norm1_g"], params["norm1_b"])
    f = jnp.maximum(x @ params["linear1_w"].T + params["linear1_b"], 0.0)
    f = f @ params["linear2_w"].T + params["linear2_b"]
    return ln(x + f, params["norm2_g"], params["norm2_b"])


if __name__ == "__main__":
    d_model, nhead, dim_feedforward, bptt = 32, 4, 64, 8
    seq_len, batch = 8, 2
    levels = int(math.log(bptt, 2))

    key = jax.random.PRNGKey(0)
    k_param, k_src, k_mask = jax.random.split(key, 3)
    params = init_params(k_param, d_model, nhead, dim_feedforward, bptt)
    src = jax.random.normal(k_src, (seq_len, batch, d_model), jnp.float32)
    src_mask = jax.random.uniform(k_mask, (batch * nhead, seq_len, levels),
                                  jnp.float32)

    out = transformer_encoder_layer(params, src, src_mask,
                                    d_model=d_model, nhead=nhead, bptt=bptt)
    out = jax.block_until_ready(out)

    ref = reference_forward(params, src, src_mask,
                            d_model=d_model, nhead=nhead, bptt=bptt)
    assert out.shape == (seq_len, batch, d_model)
    assert jnp.allclose(out, ref, atol=1e-3, rtol=1e-3), \
        float(jnp.max(jnp.abs(out - ref)))
    print("KERNEL_OK")
</pallas_src>

<mosaic_0001>
module attributes {stable_mosaic.version = 11 : i64} {
  func.func @_proj_in_kernel(%arg0: i32, %arg1: memref<16x32xf32, #tpu.memory_space<vmem>>, %arg2: memref<32x32xf32, #tpu.memory_space<vmem>>, %arg3: memref<12x32xf32, #tpu.memory_space<vmem>>, %arg4: memref<16x32xf32, #tpu.memory_space<vmem>>, %arg5: memref<16x12xf32, #tpu.memory_space<vmem>>) attributes {dimension_semantics = [#tpu.dimension_semantics<parallel>], iteration_bounds = array<i64: 1>, scalar_prefetch = 0 : i64, scratch_operands = 0 : i64, tpu.core_type = #tpu.core_type<tc>, window_params = [{transform_indices = @transform_0, window_bounds = array<i64: 16, 32>}, {pipeline_mode = #tpu.pipeline_mode<synchronous>, transform_indices = @transform_1, window_bounds = array<i64: 32, 32>}, {pipeline_mode = #tpu.pipeline_mode<synchronous>, transform_indices = @transform_2, window_bounds = array<i64: 12, 32>}, {transform_indices = @transform_3, window_bounds = array<i64: 16, 32>}, {transform_indices = @transform_4, window_bounds = array<i64: 16, 12>}]} {
    %c0 = arith.constant 0 : index
    %c0_0 = arith.constant 0 : index
    %0 = vector.load %arg1[%c0, %c0_0] : memref<16x32xf32, #tpu.memory_space<vmem>>, vector<16x32xf32>
    %c0_1 = arith.constant 0 : index
    %c0_2 = arith.constant 0 : index
    %1 = vector.load %arg2[%c0_1, %c0_2] : memref<32x32xf32, #tpu.memory_space<vmem>>, vector<32x32xf32>
    %cst = arith.constant dense<0.000000e+00> : vector<16x32xf32>
    %2 = tpu.matmul %0, %1, %cst {dimension_numbers = #tpu.dot_dimension_numbers<[1], [1], [0], [0], [0, 0, 1, 0], [], []>} : vector<16x32xf32>, vector<32x32xf32>, vector<16x32xf32> -> vector<16x32xf32>
    %c0_3 = arith.constant 0 : index
    %c0_4 = arith.constant 0 : index
    %3 = vector.load %arg4[%c0_3, %c0_4] : memref<16x32xf32, #tpu.memory_space<vmem>>, vector<16x32xf32>
    tpu.vector_store %arg4[%c0_3, %c0_4], %2 {strides = array<i32>} : memref<16x32xf32, #tpu.memory_space<vmem>>, vector<16x32xf32>,
    %c0_5 = arith.constant 0 : index
    %c0_6 = arith.constant 0 : index
    %4 = vector.load %arg3[%c0_5, %c0_6] : memref<12x32xf32, #tpu.memory_space<vmem>>, vector<12x32xf32>
    %cst_7 = arith.constant dense<0.000000e+00> : vector<16x12xf32>
    %5 = tpu.matmul %0, %4, %cst_7 {dimension_numbers = #tpu.dot_dimension_numbers<[1], [1], [0], [0], [0, 0, 1, 0], [], []>} : vector<16x32xf32>, vector<12x32xf32>, vector<16x12xf32> -> vector<16x12xf32>
    %c0_8 = arith.constant 0 : index
    %c0_9 = arith.constant 0 : index
    %6 = vector.load %arg5[%c0_8, %c0_9] : memref<16x12xf32, #tpu.memory_space<vmem>>, vector<16x12xf32>
    tpu.vector_store %arg5[%c0_8, %c0_9], %5 {strides = array<i32>} : memref<16x12xf32, #tpu.memory_space<vmem>>, vector<16x12xf32>,
    return
  }
  func.func @transform_0(%arg0: i32) -> (i32, i32) {
    %c0_i32 = arith.constant 0 : i32
    %c0_i32_0 = arith.constant 0 : i32
    return %arg0, %c0_i32 : i32, i32
  }
  func.func @transform_1(%arg0: i32) -> (i32, i32) {
    %c0_i32 = arith.constant 0 : i32
    %c0_i32_0 = arith.constant 0 : i32
    %c0_i32_1 = arith.constant 0 : i32
    return %c0_i32, %c0_i32_0 : i32, i32
  }
  func.func @transform_2(%arg0: i32) -> (i32, i32) {
    %c0_i32 = arith.constant 0 : i32
    %c0_i32_0 = arith.constant 0 : i32
    %c0_i32_1 = arith.constant 0 : i32
    return %c0_i32, %c0_i32_0 : i32, i32
  }
  func.func @transform_3(%arg0: i32) -> (i32, i32) {
    %c0_i32 = arith.constant 0 : i32
    %c0_i32_0 = arith.constant 0 : i32
    return %arg0, %c0_i32 : i32, i32
  }
  func.func @transform_4(%arg0: i32) -> (i32, i32) {
    %c0_i32 = arith.constant 0 : i32
    %c0_i32_0 = arith.constant 0 : i32
    return %arg0, %c0_i32 : i32, i32
  }
}

</mosaic_0001>

<llo_original>
// kernel: tpu_custom_call.1
$region0: #{tpu_custom_call.1}
  #allocation0 [shape = 'u32[]', space=smem, size = 0x4, offset = 0x4, fixed_abs, tag = 'smem constant byte address 0x4 - core index']
  #allocation1 [shape = 'u32[144,128]{1,0:T(1,128)}', space=vmem, size = 0x12000, scoped, tag = 'internal scratch']
  %s0 = inlined_call_operand.hbm [shape: f32[16,32], index: 0, kind: input, shape index: {}]
  %s1 = inlined_call_operand.hbm [shape: f32[32,32], index: 1, kind: input, shape index: {}]
  %s2 = inlined_call_operand.hbm [shape: f32[12,32], index: 2, kind: input, shape index: {}]
  %s3 = inlined_call_operand.hbm [shape: f32[16,32], index: 3, kind: output, shape index: {0}]
  %s4 = inlined_call_operand.hbm [shape: f32[16,12], index: 4, kind: output, shape index: {1}]
  %5 = xla_tuple %s3, %s4
  %s6 = sld [smem:[#allocation0]]
  $region42: #{tpu_custom_call.1} parent=0
    _
  %s8 = ssub.s32 1, %s6
  %s9 = scalar_select 0, %s8, %s6
  $region1: #{tpu_custom_call.1} parent=0
    #allocation2 [shape = 'u8[8192]{0}', space=vmem, size = 0x2000, scoped, tag = 'input window, operand 0, single buffered']
    #allocation3 [shape = 's32[1]{0}', space=sflag, size = 0x4, scoped, tag = 'scoped memory for tpu_custom_call.1']
    #allocation4 [shape = 's32[1]{0}', space=sflag, size = 0x4, scoped, tag = 'scoped memory for tpu_custom_call.1']
    #allocation5 [shape = 'u8[16384]{0}', space=vmem, size = 0x4000, scoped, tag = 'input window, operand 1, single buffered']
    #allocation6 [shape = 's32[1]{0}', space=sflag, size = 0x4, scoped, tag = 'scoped memory for tpu_custom_call.1']
    #allocation7 [shape = 'u8[8192]{0}', space=vmem, size = 0x2000, scoped, tag = 'input window, operand 2, single buffered']
    #allocation8 [shape = 'u8[8192]{0}', space=vmem, size = 0x2000, scoped, tag = 'output window, operand 0, single buffered']
    #allocation9 [shape = 'u8[8192]{0}', space=vmem, size = 0x2000, scoped, tag = 'output window, operand 1, single buffered']
    #allocation10 [shape = 's32[1]{0}', space=sflag, size = 0x4, scoped, tag = 'scoped memory for tpu_custom_call.1']
    %10 = vsyncpa [#allocation3], 0
    %11 = vsyncpa [#allocation6], 0
    %12 = vsyncpa [#allocation4], 0
    %13 = vsyncpa [#allocation10], 0
    // Predicated region
    $region2: #{tpu_custom_call.1} parent=1 // pred_check
      _
    $region3: #{tpu_custom_call.1} parent=1 // pred_check_branch
      %15 = sbr.rel (0) target = $region5
    $region4: #{tpu_custom_call.1} parent=1 // pred_region
      %s17 = ssub.s32 256, 256
      %18 = vsyncadd [#allocation3], %s17
      %s19 = sshll.u32 [#allocation2], 4
      %s20 = int_to_ptr.vmem [resolvable:$true] %s19
      %25 = dma.hbm_to_vmem [thread:$0]  %s0, 256, %s20, [#allocation3], 128, 128, 8
    $region5: #{tpu_custom_call.1} parent=1 // pred_fallthru
      _
    // Predicated region
    $region6: #{tpu_custom_call.1} parent=1 // pred_check
      _
    $region7: #{tpu_custom_call.1} parent=1 // pred_check_branch
      %27 = sbr.rel (0) target = $region9
    $region8: #{tpu_custom_call.1} parent=1 // pred_region
      %s29 = ssub.s32 512, 512
      %30 = vsyncadd [#allocation6], %s29
      %s31 = sshll.u32 [#allocation5], 4
      %s32 = int_to_ptr.vmem [resolvable:$true] %s31
      %37 = dma.hbm_to_vmem [thread:$0]  %s1, 512, %s32, [#allocation6], 128, 128, 8
    $region9: #{tpu_custom_call.1} parent=1 // pred_fallthru
      _
    // Predicated region
    $region10: #{tpu_custom_call.1} parent=1 // pred_check
      _
    $region11: #{tpu_custom_call.1} parent=1 // pred_check_branch
      %39 = sbr.rel (0) target = $region13
    $region12: #{tpu_custom_call.1} parent=1 // pred_region
      %s41 = ssub.s32 256, 256
      %42 = vsyncadd [#allocation6], %s41
      %s43 = sshll.u32 [#allocation7], 4
      %s44 = int_to_ptr.vmem [resolvable:$true] %s43
      %49 = dma.hbm_to_vmem [thread:$0]  %s2, 256, %s44, [#allocation6], 128, 128, 8
    $region13: #{tpu_custom_call.1} parent=1 // pred_fallthru
      _
    // Predicated region
    $region14: #{tpu_custom_call.1} parent=1 // pred_check
      _
    $region15: #{tpu_custom_call.1} parent=1 // pred_check_branch
      %51 = sbr.rel (0) target = $region17
    $region16: #{tpu_custom_call.1} parent=1 // pred_region
      %52 = dma.done [#allocation3], 256
    $region17: #{tpu_custom_call.1} parent=1 // pred_fallthru
      _
    // Predicated region
    $region18: #{tpu_custom_call.1} parent=1 // pred_check
      _
    $region19: #{tpu_custom_call.1} parent=1 // pred_check_branch
      %54 = sbr.rel (0) target = $region21
    $region20: #{tpu_custom_call.1} parent=1 // pred_region
      %55 = dma.done [#allocation6], 512
    $region21: #{tpu_custom_call.1} parent=1 // pred_fallthru
      _
    // Predicated region
    $region22: #{tpu_custom_call.1} parent=1 // pred_check
      _
    $region23: #{tpu_custom_call.1} parent=1 // pred_check_branch
      %57 = sbr.rel (0) target = $region25
    $region24: #{tpu_custom_call.1} parent=1 // pred_region
      %58 = dma.done [#allocation6], 256
    $region25: #{tpu_custom_call.1} parent=1 // pred_fallthru
      _
    %v59 = vld [vmem:[#allocation2] sm:$0xff]
    %v60 = vld [vmem:[#allocation2 + $0x8] sm:$0xff]
    %v61 = vld [vmem:[#allocation5] sm:$0xff]
    %v62 = vld [vmem:[#allocation5 + $0x8] sm:$0xff]
    %v63 = vld [vmem:[#allocation5 + $0x10] sm:$0xff]
    %v64 = vld [vmem:[#allocation5 + $0x18] sm:$0xff]
    %vm65 = vcmask 261120
    %v67 = vsel %vm65, %v59, 0
    %v70 = vsel %vm65, %v60, 0
    %v73 = vsel %vm65, %v61, 0
    %v76 = vsel %vm65, %v62, 0
    %v79 = vsel %vm65, %v63, 0
    %v82 = vsel %vm65, %v64, 0
    %84 = vmatprep.subr.mxu0 0.0
    %85 = vmatpush1.xpose.msra.mxu0 %v73
    %86 = vmatprep.subr.mxu0 0.0
    %87 = vmatpush1.xpose.msra.mxu0 %v76
    %88 = vmatprep.subr.mxu0 0.0
    %89 = vmatpush1.xpose.msra.mxu0 %v79
    %90 = vmatprep.subr.mxu0 0.0
    %91 = vmatpush1.xpose.msra.mxu0 %v82
    %92 = vmatprep.subr.mxu0 0.0
    %93 = vmatpush1.xpose.msra.mxu0 0.0
    %94 = vmatprep.subr.mxu0 0.0
    %95 = vmatpush1.xpose.msra.mxu0 0.0
    %96 = vmatprep.subr.mxu0 0.0
    %97 = vmatpush1.xpose.msra.mxu0 0.0
    %98 = vmatprep.subr.mxu0 0.0
    %99 = vmatpush1.xpose.msra.mxu0 0.0
    %100 = vmatprep.subr.mxu0 0.0
    %101 = vmatpush1.xpose.msra.mxu0 0.0
    %102 = vmatprep.subr.mxu0 0.0
    %103 = vmatpush1.xpose.msra.mxu0 0.0
    %104 = vmatprep.subr.mxu0 0.0
    %105 = vmatpush1.xpose.msra.mxu0 0.0
    %106 = vmatprep.subr.mxu0 0.0
    %107 = vmatpush1.xpose.msra.mxu0 0.0
    %108 = vmatprep.subr.mxu0 0.0
    %109 = vmatpush1.xpose.msra.mxu0 0.0
    %110 = vmatprep.subr.mxu0 0.0
    %111 = vmatpush1.xpose.msra.mxu0 0.0
    %112 = vmatprep.subr.mxu0 0.0
    %113 = vmatpush1.xpose.msra.mxu0 0.0
    %114 = vmatprep.subr.mxu0 0.0
    %115 = vmatpush1.xpose.msra.mxu0 0.0
    %116 = vmatprep.subr.mxu0 0.0
    %117 = vmatpush1.xpose.msra.mxu0 0.0
    %118 = vmatprep.subr.mxu0 0.0
    %119 = vmatpush1.xpose.msra.mxu0 0.0
    %120 = vmatprep.subr.mxu0 0.0
    %121 = vmatpush1.xpose.msra.mxu0 0.0
    %122 = vmatprep.subr.mxu0 0.0
    %123 = vmatpush1.xpose.msra.mxu0 0.0
    %124 = vmatprep.subr.mxu0 0.0
    %125 = vmatpush1.xpose.msra.mxu0 0.0
    %126 = vmatprep.subr.mxu0 0.0
    %127 = vmatpush1.xpose.msra.mxu0 0.0
    %128 = vmatprep.subr.mxu0 0.0
    %129 = vmatpush1.xpose.msra.mxu0 0.0
    %130 = vmatprep.subr.mxu0 0.0
    %131 = vmatpush1.xpose.msra.mxu0 0.0
    %132 = vmatprep.subr.mxu0 0.0
    %133 = vmatpush1.xpose.msra.mxu0 0.0
    %134 = vmatprep.subr.mxu0 0.0
    %135 = vmatpush1.xpose.msra.mxu0 0.0
    %136 = vmatprep.subr.mxu0 0.0
    %137 = vmatpush1.xpose.msra.mxu0 0.0
    %138 = vmatprep.subr.mxu0 0.0
    %139 = vmatpush1.xpose.msra.mxu0 0.0
    %140 = vmatprep.subr.mxu0 0.0
    %141 = vmatpush1.xpose.msra.mxu0 0.0
    %142 = vmatprep.subr.mxu0 0.0
    %143 = vmatpush1.xpose.msra.mxu0 0.0
    %144 = vmatprep.subr.mxu0 0.0
    %145 = vmatpush1.xpose.msra.mxu0 0.0
    %146 = vmatprep.subr.mxu0 0.0
    %147 = vmatpush1.xpose.msra.mxu0 0.0
    %148 = vmatprep.mubr.f32.mxu0 0.0
    %149 = vmatmul.mubr.f32.gmra.mrb[0].mxu0 %v67
    %v150 = vpop.f32.mrb[0].mxu0
    %v151 = vadd.f32 0.0, %v150
    %v152 = vpop.f32.mrb[0].mxu0
    %153 = vmatprep.mubr.f32.mxu0 0.0
    %154 = vmatmul.mubr.f32.gmra.mrb[0].mxu0 %v70
    %v155 = vpop.f32.mrb[0].mxu0
    %v156 = vadd.f32 0.0, %v155
    %v157 = vpop.f32.mrb[0].mxu0
    %158 = vdwg.mxu0
    %159 = vst.msk [vmem:[#allocation8] sm:$0xff] %vm65, %v151
    %160 = vst.msk [vmem:[#allocation8 + $0x8] sm:$0xff] %vm65, %v156
    %v161 = vld [vmem:[#allocation7] sm:$0xff]
    %v162 = vld [vmem:[#allocation7 + $0x8] sm:$0xf]
    %v164 = vsel %vm65, %v161, 0
    %v167 = vsel %vm65, %v162, 0
    %169 = vmatprep.subr.mxu0 0.0
    %170 = vmatpush1.xpose.msra.mxu0 %v164
    %171 = vmatprep.subr.mxu0 0.0
    %172 = vmatpush1.xpose.msra.mxu0 %v167
    %173 = vmatprep.subr.mxu0 0.0
    %174 = vmatpush1.xpose.msra.mxu0 0.0
    %175 = vmatprep.subr.mxu0 0.0
    %176 = vmatpush1.xpose.msra.mxu0 0.0
    %177 = vmatprep.subr.mxu0 0.0
    %178 = vmatpush1.xpose.msra.mxu0 0.0
    %179 = vmatprep.subr.mxu0 0.0
    %180 = vmatpush1.xpose.msra.mxu0 0.0
    %181 = vmatprep.subr.mxu0 0.0
    %182 = vmatpush1.xpose.msra.mxu0 0.0
    %183 = vmatprep.subr.mxu0 0.0
    %184 = vmatpush1.xpose.msra.mxu0 0.0
    %185 = vmatprep.subr.mxu0 0.0
    %186 = vmatpush1.xpose.msra.mxu0 0.0
    %187 = vmatprep.subr.mxu0 0.0
    %188 = vmatpush1.xpose.msra.mxu0 0.0
    %189 = vmatprep.subr.mxu0 0.0
    %190 = vmatpush1.xpose.msra.mxu0 0.0
    %191 = vmatprep.subr.mxu0 0.0
    %192 = vmatpush1.xpose.msra.mxu0 0.0
    %193 = vmatprep.subr.mxu0 0.0
    %194 = vmatpush1.xpose.msra.mxu0 0.0
    %195 = vmatprep.subr.mxu0 0.0
    %196 = vmatpush1.xpose.msra.mxu0 0.0
    %197 = vmatprep.subr.mxu0 0.0
    %198 = vmatpush1.xpose.msra.mxu0 0.0
    %199 = vmatprep.subr.mxu0 0.0
    %200 = vmatpush1.xpose.msra.mxu0 0.0
    %201 = vmatprep.subr.mxu0 0.0
    %202 = vmatpush1.xpose.msra.mxu0 0.0
    %203 = vmatprep.subr.mxu0 0.0
    %204 = vmatpush1.xpose.msra.mxu0 0.0
    %205 = vmatprep.subr.mxu0 0.0
    %206 = vmatpush1.xpose.msra.mxu0 0.0
    %207 = vmatprep.subr.mxu0 0.0
    %208 = vmatpush1.xpose.msra.mxu0 0.0
    %209 = vmatprep.subr.mxu0 0.0
    %210 = vmatpush1.xpose.msra.mxu0 0.0
    %211 = vmatprep.subr.mxu0 0.0
    %212 = vmatpush1.xpose.msra.mxu0 0.0
    %213 = vmatprep.subr.mxu0 0.0
    %214 = vmatpush1.xpose.msra.mxu0 0.0
    %215 = vmatprep.subr.mxu0 0.0
    %216 = vmatpush1.xpose.msra.mxu0 0.0
    %217 = vmatprep.subr.mxu0 0.0
    %218 = vmatpush1.xpose.msra.mxu0 0.0
    %219 = vmatprep.subr.mxu0 0.0
    %220 = vmatpush1.xpose.msra.mxu0 0.0
    %221 = vmatprep.subr.mxu0 0.0
    %222 = vmatpush1.xpose.msra.mxu0 0.0
    %223 = vmatprep.subr.mxu0 0.0
    %224 = vmatpush1.xpose.msra.mxu0 0.0
    %225 = vmatprep.subr.mxu0 0.0
    %226 = vmatpush1.xpose.msra.mxu0 0.0
    %227 = vmatprep.subr.mxu0 0.0
    %228 = vmatpush1.xpose.msra.mxu0 0.0
    %229 = vmatprep.subr.mxu0 0.0
    %230 = vmatpush1.xpose.msra.mxu0 0.0
    %231 = vmatprep.subr.mxu0 0.0
    %232 = vmatpush1.xpose.msra.mxu0 0.0
    %233 = vmatprep.mubr.f32.mxu0 0.0
    %234 = vmatmul.mubr.f32.gmra.mrb[0].mxu0 %v67
    %v235 = vpop.f32.mrb[0].mxu0
    %v236 = vadd.f32 0.0, %v235
    %v237 = vpop.f32.mrb[0].mxu0
    %238 = vmatprep.mubr.f32.mxu0 0.0
    %239 = vmatmul.mubr.f32.gmra.mrb[0].mxu0 %v70
    %v240 = vpop.f32.mrb[0].mxu0
    %v241 = vadd.f32 0.0, %v240
    %v242 = vpop.f32.mrb[0].mxu0
    %243 = vdwg.mxu0
    %vm244 = vcmask 97280
    %245 = vst.msk [vmem:[#allocation9] sm:$0xff] %vm244, %v236
    %246 = vst.msk [vmem:[#allocation9 + $0x8] sm:$0xff] %vm244, %v241
    // Predicated region
    $region26: #{tpu_custom_call.1} parent=1 // pred_check
      _
    $region27: #{tpu_custom_call.1} parent=1 // pred_check_branch
      %248 = sbr.rel (0) target = $region29
    $region28: #{tpu_custom_call.1} parent=1 // pred_region
      %s250 = ssub.s32 256, 256
      %251 = vsyncadd [#allocation4], %s250
      %s252 = sshll.u32 [#allocation8], 4
      %s253 = int_to_ptr.vmem [resolvable:$true] %s252
      %258 = dma.vmem_to_hbm [thread:$0]  %s253, 256, %s3, [#allocation4], 128, 128, 8
    $region29: #{tpu_custom_call.1} parent=1 // pred_fallthru
      _
    // Predicated region
    $region30: #{tpu_custom_call.1} parent=1 // pred_check
      _
    $region31: #{tpu_custom_call.1} parent=1 // pred_check_branch
      %260 = sbr.rel (0) target = $region33
    $region32: #{tpu_custom_call.1} parent=1 // pred_region
      %s262 = ssub.s32 256, 256
      %263 = vsyncadd [#allocation10], %s262
      %s264 = sshll.u32 [#allocation9], 4
      %s265 = int_to_ptr.vmem [resolvable:$true] %s264
      %270 = dma.vmem_to_hbm [thread:$0]  %s265, 256, %s4, [#allocation10], 128, 128, 8
    $region33: #{tpu_custom_call.1} parent=1 // pred_fallthru
      _
    // Predicated region
    $region34: #{tpu_custom_call.1} parent=1 // pred_check
      _
    $region35: #{tpu_custom_call.1} parent=1 // pred_check_branch
      %272 = sbr.rel (0) target = $region37
    $region36: #{tpu_custom_call.1} parent=1 // pred_region
      %273 = dma.done [#allocation4], 256
    $region37: #{tpu_custom_call.1} parent=1 // pred_fallthru
      _
    // Predicated region
    $region38: #{tpu_custom_call.1} parent=1 // pred_check
      _
    $region39: #{tpu_custom_call.1} parent=1 // pred_check_branch
      %275 = sbr.rel (0) target = $region41
    $region40: #{tpu_custom_call.1} parent=1 // pred_region
      %276 = dma.done [#allocation10], 256
    $region41: #{tpu_custom_call.1} parent=1 // pred_fallthru
      _
    %277 = vsyncpa [#allocation3], 1
    %278 = vsyncpa [#allocation6], 1
    %279 = vsyncpa [#allocation4], 1
    %280 = vsyncpa [#allocation10], 1

</llo_original>
